<compile_context>
chip_gen: v7x
topology: tpu7x:2x2x1
jax: 0.10.0
libtpu: 0.0.40
codegen_flags: <defaults>
</compile_context>

<pallas_src>
import jax
import jax.numpy as jnp
from jax.experimental import pallas as pl
from jax.experimental.pallas import tpu as pltpu


HIDDEN = 512          # RT1 token width (fixed by the module: LayerNorm(512))
LN_EPS = 1e-5         # nn.LayerNorm default
LANE = 128
SUBLANE = 8


def _round_up(x, m):
    return ((x + m - 1) // m) * m


# --------------------------------------------------------------------------
# Pallas kernel: fused [feat @ enc_w + enc_b] -> LayerNorm(512) -> Linear head
# (LayerNorm's affine is pre-folded into W / b by the wrapper.)
# --------------------------------------------------------------------------
def rt1_fused_kernel(feat_ref, encw_ref, encb_ref, w_ref, b_ref, out_ref):
    # feat_ref : (tb, K)     bf16     encw_ref : (K, 512)    bf16
    # encb_ref : (1, 512)    f32
    # w_ref    : (512, Apad) bf16     b_ref    : (1, Apad)   f32
    # out_ref  : (tb, Apad)  f32
    # token = feat @ enc_w + enc_b   (bf16 operands, f32 accumulate on MXU)
    token = jnp.dot(feat_ref[...], encw_ref[...],
                    preferred_element_type=jnp.float32)
    token = token + encb_ref[...]

    # LayerNorm over the feature axis (f32 VPU math; affine folded into head).
    mean = jnp.mean(token, axis=-1, keepdims=True)
    cen = token - mean
    var = jnp.mean(cen * cen, axis=-1, keepdims=True)
    y = cen * jax.lax.rsqrt(var + LN_EPS)

    # action_net (with folded LN affine): y @ W' + b'
    act = jnp.dot(y.astype(jnp.bfloat16), w_ref[...],
                  preferred_element_type=jnp.float32)
    out_ref[...] = (act + b_ref[...]).astype(out_ref.dtype)


def rt1_fused_head(feat, enc_w, enc_b, gamma, beta, w, b, *, block_b=2048):
    """feat: (B, K) -> (B, num_actions).  Batch-tiled, lane-padded pallas_call."""
    B, K = feat.shape
    A = w.shape[1]
    Apad = _round_up(A, LANE)

    # Fold the LayerNorm affine into the action head (one-time, tiny).
    #   (y*gamma + beta) @ W + b  ==  y @ (gamma[:,None]*W) + (beta @ W + b)
    w_fold = gamma[:, None].astype(jnp.float32) * w.astype(jnp.float32)
    b_fold = beta.astype(jnp.float32) @ w.astype(jnp.float32) + b.astype(jnp.float32)

    # Rows per grid step: multiple of 8, capped at block_b.  For large batches
    # keep >= 2 grid steps so the "parallel" axis can span v7x's two TCs.
    if B >= 1024:
        tb = min(block_b, _round_up(pl.cdiv(B, 2), SUBLANE))
    else:
        tb = min(block_b, _round_up(B, SUBLANE))
    grid = (pl.cdiv(B, tb),)

    # bf16 inputs for the MXU (f32 accumulate); biases stay f32.
    feat_bf = feat.astype(jnp.bfloat16)                       # fuses upstream
    encw_bf = enc_w.astype(jnp.bfloat16)
    encb_p = enc_b.reshape(1, HIDDEN).astype(jnp.float32)
    w_p = jnp.pad(w_fold, ((0, 0), (0, Apad - A))).astype(jnp.bfloat16)
    b_p = jnp.pad(b_fold.reshape(1, A), ((0, 0), (0, Apad - A)))

    cost = pl.CostEstimate(
        flops=2 * B * K * HIDDEN + 2 * B * HIDDEN * Apad,
        transcendentals=B,
        bytes_accessed=(B * K * 2 + K * HIDDEN * 2 + HIDDEN * 4
                        + HIDDEN * Apad * 2 + Apad * 4 + B * Apad * 4),
    )

    out = pl.pallas_call(
        rt1_fused_kernel,
        out_shape=jax.ShapeDtypeStruct((B, Apad), jnp.float32),
        grid=grid,
        in_specs=[
            pl.BlockSpec((tb, K), lambda i: (i, 0)),          # feat (tiled)
            pl.BlockSpec((K, HIDDEN), lambda i: (0, 0)),      # enc_w (resident)
            pl.BlockSpec((1, HIDDEN), lambda i: (0, 0)),      # enc_b (resident)
            pl.BlockSpec((HIDDEN, Apad), lambda i: (0, 0)),   # W' (resident)
            pl.BlockSpec((1, Apad), lambda i: (0, 0)),        # b' (resident)
        ],
        out_specs=pl.BlockSpec((tb, Apad), lambda i: (i, 0)),
        compiler_params=pltpu.CompilerParams(
            dimension_semantics=("parallel",),
            vmem_limit_bytes=32 * 1024 * 1024,
        ),
        cost_estimate=cost,
    )(feat_bf, encw_bf, encb_p, w_p, b_p)

    # Only the lane padding needs slicing off (batch was never padded).
    return out[:, :A]


# --------------------------------------------------------------------------
# Plain-JAX glue: deterministic stand-in for the injected RT1 backbone.
# --------------------------------------------------------------------------
# TODO(synk): the real RT1 backbone / state_net are external submodules passed
# into RT1State.__init__; they are not defined by this module, so a minimal
# deterministic pooled-feature encoder stands in for them (its final linear
# projection to 512 is fused into the Pallas kernel above).
def rt1_features_placeholder(img, instruction, state):
    img_feat = jnp.mean(img, axis=(2, 3))        # (B, C)   NCHW global avg pool
    instr_feat = jnp.mean(instruction, axis=1)   # (B, E)   mean over tokens
    return jnp.concatenate([img_feat, instr_feat, state], axis=-1)  # (B, K)


# --------------------------------------------------------------------------
# Parameter construction + full forward
# --------------------------------------------------------------------------
def init_params(key, in_feat, num_actions):
    k1, k2, k3, k4, k5 = jax.random.split(key, 5)
    return dict(
        # placeholder encoder (glue, fused into the kernel)
        enc_w=jax.random.normal(k1, (in_feat, HIDDEN), jnp.float32) * 0.02,
        enc_b=jnp.zeros((HIDDEN,), jnp.float32),
        # mlp_extractor = LayerNorm(512).  (nn.LayerNorm default init is
        # gamma=1, beta=0; use non-trivial values here to exercise the
        # affine-fold path end to end.)
        ln_gamma=1.0 + 0.1 * jax.random.normal(k4, (HIDDEN,), jnp.float32),
        ln_beta=0.05 * jax.random.normal(k5, (HIDDEN,), jnp.float32),
        # action_net = Linear(512, num_actions)
        w=jax.random.normal(k2, (HIDDEN, num_actions), jnp.float32) * 0.02,
        b=jax.random.normal(k3, (num_actions,), jnp.float32) * 0.01,
    )


def rt1_state_forward(img, instruction, state, params):
    feat = rt1_features_placeholder(img, instruction, state)
    action = rt1_fused_head(feat, params["enc_w"], params["enc_b"],
                            params["ln_gamma"], params["ln_beta"],
                            params["w"], params["b"])
    return action, None


# --------------------------------------------------------------------------
# Pure-JAX f32 reference for a sanity check of the fused kernel.
# --------------------------------------------------------------------------
def rt1_forward_ref(img, instruction, state, params):
    feat = rt1_features_placeholder(img, instruction, state)
    token = feat @ params["enc_w"] + params["enc_b"]
    mean = jnp.mean(token, axis=-1, keepdims=True)
    var = jnp.mean((token - mean) ** 2, axis=-1, keepdims=True)
    y = (token - mean) / jnp.sqrt(var + LN_EPS)
    y = y * params["ln_gamma"] + params["ln_beta"]
    return y @ params["w"] + params["b"]


if __name__ == "__main__":
    key = jax.random.PRNGKey(0)
    k_img, k_instr, k_state, k_param = jax.random.split(key, 4)

    # Small shapes consistent with the forward signature.
    B, C, H, W = 2, 3, 16, 16          # img  (NCHW)
    T, E = 8, 32                       # instruction token embeddings
    S = 13                             # state dims
    NUM_ACTIONS = 8

    img = jax.random.normal(k_img, (B, C, H, W), jnp.float32)
    instruction = jax.random.normal(k_instr, (B, T, E), jnp.float32)
    state = jax.random.normal(k_state, (B, S), jnp.float32)

    params = init_params(k_param, in_feat=C + E + S, num_actions=NUM_ACTIONS)

    fwd = jax.jit(rt1_state_forward)
    action, value = fwd(img, instruction, state, params)
    action = jax.block_until_ready(action)
    assert value is None
    assert action.shape == (B, NUM_ACTIONS)
    assert action.dtype == jnp.float32

    # Check the fused Pallas path against the pure-f32 reference.
    # (Kernel uses bf16 MXU operands with f32 accumulation -> looser tolerance.)
    ref = rt1_forward_ref(img, instruction, state, params)
    assert bool(jnp.all(jnp.isfinite(action)))
    assert jnp.allclose(action, ref, atol=3e-2, rtol=3e-2)

    print("KERNEL_OK")
</pallas_src>

<mosaic_0001>
module attributes {stable_mosaic.version = 11 : i64} {
  func.func @rt1_fused_kernel(%arg0: i32, %arg1: memref<8x48xbf16, #tpu.memory_space<vmem>>, %arg2: memref<48x512xbf16, #tpu.memory_space<vmem>>, %arg3: memref<1x512xf32, #tpu.memory_space<vmem>>, %arg4: memref<512x128xbf16, #tpu.memory_space<vmem>>, %arg5: memref<1x128xf32, #tpu.memory_space<vmem>>, %arg6: memref<8x128xf32, #tpu.memory_space<vmem>>) attributes {dimension_semantics = [#tpu.dimension_semantics<parallel>], iteration_bounds = array<i64: 1>, scalar_prefetch = 0 : i64, scratch_operands = 0 : i64, tpu.core_type = #tpu.core_type<tc>, window_params = [{transform_indices = @transform_0, window_bounds = array<i64: 8, 48>}, {pipeline_mode = #tpu.pipeline_mode<synchronous>, transform_indices = @transform_1, window_bounds = array<i64: 48, 512>}, {pipeline_mode = #tpu.pipeline_mode<synchronous>, transform_indices = @transform_2, window_bounds = array<i64: 1, 512>}, {pipeline_mode = #tpu.pipeline_mode<synchronous>, transform_indices = @transform_3, window_bounds = array<i64: 512, 128>}, {pipeline_mode = #tpu.pipeline_mode<synchronous>, transform_indices = @transform_4, window_bounds = array<i64: 1, 128>}, {transform_indices = @transform_5, window_bounds = array<i64: 8, 128>}]} {
    %c0 = arith.constant 0 : index
    %c0_0 = arith.constant 0 : index
    %0 = vector.load %arg1[%c0, %c0_0] : memref<8x48xbf16, #tpu.memory_space<vmem>>, vector<8x48xbf16>
    %c0_1 = arith.constant 0 : index
    %c0_2 = arith.constant 0 : index
    %1 = vector.load %arg2[%c0_1, %c0_2] : memref<48x512xbf16, #tpu.memory_space<vmem>>, vector<48x512xbf16>
    %cst = arith.constant dense<0.000000e+00> : vector<8x512xf32>
    %2 = tpu.matmul %0, %1, %cst {dimension_numbers = #tpu.dot_dimension_numbers<[1], [0], [0], [1], [0, 0, 1, 1], [], []>} : vector<8x48xbf16>, vector<48x512xbf16>, vector<8x512xf32> -> vector<8x512xf32>
    %c0_3 = arith.constant 0 : index
    %c0_4 = arith.constant 0 : index
    %3 = vector.load %arg3[%c0_3, %c0_4] : memref<1x512xf32, #tpu.memory_space<vmem>>, vector<1x512xf32>
    %4 = vector.broadcast %3 : vector<1x512xf32> to vector<8x512xf32>
    %5 = arith.addf %2, %4 : vector<8x512xf32>
    %cst_5 = arith.constant dense<0.000000e+00> : vector<8xf32>
    %6 = vector.multi_reduction <add>, %5, %cst_5 [1] : vector<8x512xf32> to vector<8xf32>
    %7 = vector.shape_cast %6 : vector<8xf32> to vector<8x1xf32>
    %cst_6 = arith.constant 5.120000e+02 : f32
    %8 = vector.broadcast %cst_6 : f32 to vector<8x1xf32>
    %9 = arith.divf %7, %8 : vector<8x1xf32>
    %10 = vector.broadcast %9 : vector<8x1xf32> to vector<8x512xf32>
    %11 = arith.subf %5, %10 : vector<8x512xf32>
    %12 = arith.mulf %11, %11 : vector<8x512xf32>
    %cst_7 = arith.constant dense<0.000000e+00> : vector<8xf32>
    %13 = vector.multi_reduction <add>, %12, %cst_7 [1] : vector<8x512xf32> to vector<8xf32>
    %14 = vector.shape_cast %13 : vector<8xf32> to vector<8x1xf32>
    %cst_8 = arith.constant 5.120000e+02 : f32
    %15 = vector.broadcast %cst_8 : f32 to vector<8x1xf32>
    %16 = arith.divf %14, %15 : vector<8x1xf32>
    %cst_9 = arith.constant 9.99999974E-6 : f32
    %17 = vector.broadcast %cst_9 : f32 to vector<8x1xf32>
    %18 = arith.addf %16, %17 : vector<8x1xf32>
    %19 = math.rsqrt %18 : vector<8x1xf32>
    %20 = vector.broadcast %19 : vector<8x1xf32> to vector<8x512xf32>
    %21 = arith.mulf %11, %20 : vector<8x512xf32>
    %22 = arith.truncf %21 : vector<8x512xf32> to vector<8x512xbf16>
    %c0_10 = arith.constant 0 : index
    %c0_11 = arith.constant 0 : index
    %23 = vector.load %arg4[%c0_10, %c0_11] : memref<512x128xbf16, #tpu.memory_space<vmem>>, vector<512x128xbf16>
    %cst_12 = arith.constant dense<0.000000e+00> : vector<8x128xf32>
    %24 = tpu.matmul %22, %23, %cst_12 {dimension_numbers = #tpu.dot_dimension_numbers<[1], [0], [0], [1], [0, 0, 1, 1], [], []>} : vector<8x512xbf16>, vector<512x128xbf16>, vector<8x128xf32> -> vector<8x128xf32>
    %c0_13 = arith.constant 0 : index
    %c0_14 = arith.constant 0 : index
    %25 = vector.load %arg5[%c0_13, %c0_14] : memref<1x128xf32, #tpu.memory_space<vmem>>, vector<1x128xf32>
    %26 = vector.broadcast %25 : vector<1x128xf32> to vector<8x128xf32>
    %27 = arith.addf %24, %26 : vector<8x128xf32>
    %c0_15 = arith.constant 0 : index
    %c0_16 = arith.constant 0 : index
    %28 = vector.load %arg6[%c0_15, %c0_16] : memref<8x128xf32, #tpu.memory_space<vmem>>, vector<8x128xf32>
    tpu.vector_store %arg6[%c0_15, %c0_16], %27 {strides = array<i32>} : memref<8x128xf32, #tpu.memory_space<vmem>>, vector<8x128xf32>,
    return
  }
  func.func @transform_0(%arg0: i32) -> (i32, i32) {
    %c0_i32 = arith.constant 0 : i32
    %c0_i32_0 = arith.constant 0 : i32
    return %arg0, %c0_i32 : i32, i32
  }
  func.func @transform_1(%arg0: i32) -> (i32, i32) {
    %c0_i32 = arith.constant 0 : i32
    %c0_i32_0 = arith.constant 0 : i32
    %c0_i32_1 = arith.constant 0 : i32
    return %c0_i32, %c0_i32_0 : i32, i32
  }
  func.func @transform_2(%arg0: i32) -> (i32, i32) {
    %c0_i32 = arith.constant 0 : i32
    %c0_i32_0 = arith.constant 0 : i32
    %c0_i32_1 = arith.constant 0 : i32
    return %c0_i32, %c0_i32_0 : i32, i32
  }
  func.func @transform_3(%arg0: i32) -> (i32, i32) {
    %c0_i32 = arith.constant 0 : i32
    %c0_i32_0 = arith.constant 0 : i32
    %c0_i32_1 = arith.constant 0 : i32
    return %c0_i32, %c0_i32_0 : i32, i32
  }
  func.func @transform_4(%arg0: i32) -> (i32, i32) {
    %c0_i32 = arith.constant 0 : i32
    %c0_i32_0 = arith.constant 0 : i32
    %c0_i32_1 = arith.constant 0 : i32
    return %c0_i32, %c0_i32_0 : i32, i32
  }
  func.func @transform_5(%arg0: i32) -> (i32, i32) {
    %c0_i32 = arith.constant 0 : i32
    %c0_i32_0 = arith.constant 0 : i32
    return %arg0, %c0_i32 : i32, i32
  }
}

</mosaic_0001>

<llo_original>
// kernel: rt1_state_forward.1
$region0: #{rt1_state_forward.1}
  #allocation0 [shape = 'u32[]', space=smem, size = 0x4, offset = 0x4, fixed_abs, tag = 'smem constant byte address 0x4 - core index']
  #allocation1 [shape = 'u32[144,128]{1,0:T(1,128)}', space=vmem, size = 0x12000, scoped, tag = 'internal scratch']
  %s0 = inlined_call_operand.vmem [shape: bf16[2,48], index: 0, kind: input, shape index: {}]
  %s1 = inlined_call_operand.vmem [shape: bf16[48,512], index: 1, kind: input, shape index: {}]
  %s2 = inlined_call_operand.vmem [shape: f32[1,512], index: 2, kind: input, shape index: {}]
  %s3 = inlined_call_operand.vmem [shape: bf16[512,128], index: 3, kind: input, shape index: {}]
  %s4 = inlined_call_operand.vmem [shape: f32[1,128], index: 4, kind: input, shape index: {}]
  %s5 = inlined_call_operand.hbm [shape: f32[2,128], index: 5, kind: output, shape index: {}]
  %s6 = sld [smem:[#allocation0]]
  $region30: #{rt1_state_forward.1} parent=0
    _
  %s8 = ssub.s32 1, %s6
  %s9 = scalar_select 0, %s8, %s6
  $region1: #{rt1_state_forward.1} parent=0
    #allocation2 [shape = 'u8[4096]{0}', space=vmem, size = 0x1000, scoped, tag = 'output window, operand 0, single buffered']
    #allocation3 [shape = 's32[1]{0}', space=sflag, size = 0x4, scoped, tag = 'scoped memory for rt1_state_forward.1']
    %10 = vsyncpa [#allocation3], 0
    // Predicated region
    $region2: #{rt1_state_forward.1} parent=1 // pred_check
      _
    $region3: #{rt1_state_forward.1} parent=1 // pred_check_branch
      %12 = sbr.rel (0) target = $region5
    $region4: #{rt1_state_forward.1} parent=1 // pred_region
      _
    $region5: #{rt1_state_forward.1} parent=1 // pred_fallthru
      _
    // Predicated region
    $region6: #{rt1_state_forward.1} parent=1 // pred_check
      _
    $region7: #{rt1_state_forward.1} parent=1 // pred_check_branch
      %14 = sbr.rel (0) target = $region9
    $region8: #{rt1_state_forward.1} parent=1 // pred_region
      _
    $region9: #{rt1_state_forward.1} parent=1 // pred_fallthru
      _
    // Predicated region
    $region10: #{rt1_state_forward.1} parent=1 // pred_check
      _
    $region11: #{rt1_state_forward.1} parent=1 // pred_check_branch
      %16 = sbr.rel (0) target = $region13
    $region12: #{rt1_state_forward.1} parent=1 // pred_region
      _
    $region13: #{rt1_state_forward.1} parent=1 // pred_fallthru
      _
    // Predicated region
    $region14: #{rt1_state_forward.1} parent=1 // pred_check
      _
    $region15: #{rt1_state_forward.1} parent=1 // pred_check_branch
      %18 = sbr.rel (0) target = $region17
    $region16: #{rt1_state_forward.1} parent=1 // pred_region
      _
    $region17: #{rt1_state_forward.1} parent=1 // pred_fallthru
      _
    // Predicated region
    $region18: #{rt1_state_forward.1} parent=1 // pred_check
      _
    $region19: #{rt1_state_forward.1} parent=1 // pred_check_branch
      %20 = sbr.rel (0) target = $region21
    $region20: #{rt1_state_forward.1} parent=1 // pred_region
      _
    $region21: #{rt1_state_forward.1} parent=1 // pred_fallthru
      _
    %v22 = vld [vmem:[%s0] sm:$0x1]
    %v23 = vld [vmem:[%s0 + $0x1] sm:$0x1]
    %v24 = vld [vmem:[%s0 + $0x2] sm:$0x1]
    %v25 = vld [vmem:[%s0 + $0x3] sm:$0x1]
    %v26 = vld [vmem:[%s1] sm:$0xff]
    %v27 = vld [vmem:[%s1 + $0x8] sm:$0xff]
    %v28 = vld [vmem:[%s1 + $0x10] sm:$0xff]
    %v29 = vld [vmem:[%s1 + $0x18] sm:$0xff]
    %v30 = vld [vmem:[%s1 + $0x20] sm:$0xff]
    %v31 = vld [vmem:[%s1 + $0x28] sm:$0xff]
    %v32 = vld [vmem:[%s1 + $0x30] sm:$0xff]
    %v33 = vld [vmem:[%s1 + $0x38] sm:$0xff]
    %v34 = vld [vmem:[%s1 + $0x40] sm:$0xff]
    %v35 = vld [vmem:[%s1 + $0x48] sm:$0xff]
    %v36 = vld [vmem:[%s1 + $0x50] sm:$0xff]
    %v37 = vld [vmem:[%s1 + $0x58] sm:$0xff]
    %v38 = vld [vmem:[%s2] sm:$0xf]
    %v40 = vlaneseq
    %v41 = vshrl.u32 %v40, 7
    %v42 = vsub.s32 0, %v41
    %v43 = vrot.slane %v38, %v42
    %v44 = vlaneseq
    %v45 = vshrl.u32 %v44, 7
    %v46 = vsub.s32 1, %v45
    %v47 = vrot.slane %v38, %v46
    %v48 = vlaneseq
    %v49 = vshrl.u32 %v48, 7
    %v50 = vsub.s32 2, %v49
    %v51 = vrot.slane %v38, %v50
    %v52 = vlaneseq
    %v53 = vshrl.u32 %v52, 7
    %v54 = vsub.s32 3, %v53
    %v55 = vrot.slane %v38, %v54
    %v64 = vcombine.low %v22, %v23
    %v65 = vcombine.low %v24, %v25
    %v67 = vunpack.c.l.s4 1966171168
    %v68 = vunpack.c.0.s8 %v67
    %v69 = vlaneseq
    %v70 = vshrl.u32 %v69, 7
    %v71 = vsub.s32 %v68, %v70
    %v72 = vrot.slane %v64, %v71
    %v74 = vunpack.c.l.s4 1966171168
    %v75 = vunpack.c.0.s8 %v74
    %v76 = vlaneseq
    %v77 = vshrl.u32 %v76, 7
    %v78 = vsub.s32 %v75, %v77
    %v79 = vrot.slane %v65, %v78
    %v80 = vcombine.low %v72, %v79
    %v82 = vunpack.c.l.s4 1966171168
    %v83 = vunpack.c.0.s8 %v82
    %v84 = vlaneseq
    %v85 = vshrl.u32 %v84, 7
    %v86 = vsub.s32 %v83, %v85
    %v87 = vrot.slane %v80, %v86
    %v100 = vunpack.c.l.b16 %v26
    %v101 = vunpack.c.h.b16 %v26
    %v102 = vunpack.c.l.b16 %v27
    %v103 = vunpack.c.h.b16 %v27
    %v104 = vunpack.c.l.b16 %v28
    %v105 = vunpack.c.h.b16 %v28
    %v106 = vunpack.c.l.b16 %v29
    %v107 = vunpack.c.h.b16 %v29
    %v108 = vunpack.c.l.b16 %v30
    %v109 = vunpack.c.h.b16 %v30
    %v110 = vunpack.c.l.b16 %v31
    %v111 = vunpack.c.h.b16 %v31
    %v112 = vunpack.c.l.b16 %v32
    %v113 = vunpack.c.h.b16 %v32
    %v114 = vunpack.c.l.b16 %v33
    %v115 = vunpack.c.h.b16 %v33
    %v116 = vunpack.c.l.b16 %v34
    %v117 = vunpack.c.h.b16 %v34
    %v118 = vunpack.c.l.b16 %v35
    %v119 = vunpack.c.h.b16 %v35
    %v120 = vunpack.c.l.b16 %v36
    %v121 = vunpack.c.h.b16 %v36
    %v122 = vunpack.c.l.b16 %v37
    %v123 = vunpack.c.h.b16 %v37
    %v124 = vpack.c.b16 %v104, %v100
    %v125 = vpack.c.b16 %v105, %v101
    %v126 = vpack.c.b16 %v106, %v102
    %v127 = vpack.c.b16 %v107, %v103
    %v128 = vpack.c.b16 %v112, %v108
    %v129 = vpack.c.b16 %v113, %v109
    %v130 = vpack.c.b16 %v114, %v110
    %v131 = vpack.c.b16 %v115, %v111
    %v132 = vpack.c.b16 %v120, %v116
    %v133 = vpack.c.b16 %v121, %v117
    %v134 = vpack.c.b16 %v122, %v118
    %v135 = vpack.c.b16 %v123, %v119
    %vm148 = vcmask 392192
    %v150 = vsel %vm148, %v87, 0
    %152 = vmatprep.subr.bf16.mxu0 %v125
    %153 = vmatpush1.bf16.msra.mxu0 %v124
    %154 = vmatprep.subr.bf16.mxu0 %v129
    %155 = vmatpush1.bf16.msra.mxu0 %v128
    %156 = vmatprep.subr.bf16.mxu0 %v133
    %157 = vmatpush1.bf16.msra.mxu0 %v132
    %158 = vmatprep.subr.bf16.mxu0 0
    %159 = vmatpush1.bf16.msra.mxu0 0
    %160 = vmatprep.subr.bf16.mxu0 0
    %161 = vmatpush1.bf16.msra.mxu0 0
    %162 = vmatprep.subr.bf16.mxu0 0
    %163 = vmatpush1.bf16.msra.mxu0 0
    %164 = vmatprep.subr.bf16.mxu0 0
    %165 = vmatpush1.bf16.msra.mxu0 0
    %166 = vmatprep.subr.bf16.mxu0 0
    %167 = vmatpush1.bf16.msra.mxu0 0
    %168 = vmatprep.subr.bf16.mxu0 0
    %169 = vmatpush1.bf16.msra.mxu0 0
    %170 = vmatprep.subr.bf16.mxu0 0
    %171 = vmatpush1.bf16.msra.mxu0 0
    %172 = vmatprep.subr.bf16.mxu0 0
    %173 = vmatpush1.bf16.msra.mxu0 0
    %174 = vmatprep.subr.bf16.mxu0 0
    %175 = vmatpush1.bf16.msra.mxu0 0
    %176 = vmatprep.subr.bf16.mxu0 0
    %177 = vmatpush1.bf16.msra.mxu0 0
    %178 = vmatprep.subr.bf16.mxu0 0
    %179 = vmatpush1.bf16.msra.mxu0 0
    %180 = vmatprep.subr.bf16.mxu0 0
    %181 = vmatpush1.bf16.msra.mxu0 0
    %182 = vmatprep.subr.bf16.mxu0 0
    %183 = vmatpush1.bf16.msra.mxu0 0
    %184 = vmatprep.mubr.bf16.mxu0 0
    %185 = vmatmul.mubr.bf16.gmra.mrb[0].mxu0 %v150
    %v186 = vpop.f32.mrb[0].mxu0
    %v187 = vadd.f32 %v43, %v186
    %v188 = vpop.f32.mrb[0].mxu0
    %v189 = vadd.f32 %v47, %v188
    %v190 = vpop.f32.mrb[0].mxu0
    %v191 = vpop.f32.mrb[0].mxu0
    %192 = vdwg.mxu0
    %193 = vmatprep.subr.bf16.mxu0 %v127
    %194 = vmatpush1.bf16.msra.mxu0 %v126
    %195 = vmatprep.subr.bf16.mxu0 %v131
    %196 = vmatpush1.bf16.msra.mxu0 %v130
    %197 = vmatprep.subr.bf16.mxu0 %v135
    %198 = vmatpush1.bf16.msra.mxu0 %v134
    %199 = vmatprep.subr.bf16.mxu0 0
    %200 = vmatpush1.bf16.msra.mxu0 0
    %201 = vmatprep.subr.bf16.mxu0 0
    %202 = vmatpush1.bf16.msra.mxu0 0
    %203 = vmatprep.subr.bf16.mxu0 0
    %204 = vmatpush1.bf16.msra.mxu0 0
    %205 = vmatprep.subr.bf16.mxu0 0
    %206 = vmatpush1.bf16.msra.mxu0 0
    %207 = vmatprep.subr.bf16.mxu0 0
    %208 = vmatpush1.bf16.msra.mxu0 0
    %209 = vmatprep.subr.bf16.mxu0 0
    %210 = vmatpush1.bf16.msra.mxu0 0
    %211 = vmatprep.subr.bf16.mxu0 0
    %212 = vmatpush1.bf16.msra.mxu0 0
    %213 = vmatprep.subr.bf16.mxu0 0
    %214 = vmatpush1.bf16.msra.mxu0 0
    %215 = vmatprep.subr.bf16.mxu0 0
    %216 = vmatpush1.bf16.msra.mxu0 0
    %217 = vmatprep.subr.bf16.mxu0 0
    %218 = vmatpush1.bf16.msra.mxu0 0
    %219 = vmatprep.subr.bf16.mxu0 0
    %220 = vmatpush1.bf16.msra.mxu0 0
    %221 = vmatprep.subr.bf16.mxu0 0
    %222 = vmatpush1.bf16.msra.mxu0 0
    %223 = vmatprep.subr.bf16.mxu0 0
    %224 = vmatpush1.bf16.msra.mxu0 0
    %225 = vmatprep.mubr.bf16.mxu0 0
    %226 = vmatmul.mubr.bf16.gmra.mrb[0].mxu0 %v150
    %v227 = vpop.f32.mrb[0].mxu0
    %v228 = vadd.f32 %v51, %v227
    %v229 = vpop.f32.mrb[0].mxu0
    %v230 = vadd.f32 %v55, %v229
    %v231 = vpop.f32.mrb[0].mxu0
    %v232 = vpop.f32.mrb[0].mxu0
    %233 = vdwg.mxu0
    %v234 = vadd.f32 %v187, %v189
    %v235 = vadd.f32 %v234, %v228
    %v236 = vadd.f32 %v235, %v230
    %237 = vadd.xlane.f32.xlu0 %v236
    %v238 = vpop.xlane.xlu0 %237
    %v239 = vrcp.pop 512.0
    %v240 = vmul.f32 %v238, %v239
    %v241 = vsub.f32 %v187, %v240
    %v242 = vsub.f32 %v189, %v240
    %v243 = vsub.f32 %v228, %v240
    %v244 = vsub.f32 %v230, %v240
    %v245 = vmul.f32 %v241, %v241
    %v246 = vmul.f32 %v242, %v242
    %v247 = vmul.f32 %v243, %v243
    %v248 = vmul.f32 %v244, %v244
    %v249 = vadd.f32 %v245, %v246
    %v250 = vadd.f32 %v249, %v247
    %v251 = vadd.f32 %v250, %v248
    %252 = vadd.xlane.f32.xlu0 %v251
    %v253 = vpop.xlane.xlu0 %252
    %v254 = vmul.f32 %v253, %v239
    %v255 = vadd.f32 %v254, 1e-05
    %v256 = vrsqrt.pop %v255
    %v257 = vmul.f32 %v241, %v256
    %v258 = vmul.f32 %v242, %v256
    %v259 = vmul.f32 %v243, %v256
    %v260 = vmul.f32 %v244, %v256
    %v261 = vpack.c.bf16 %v257, %v257
    %v262 = vpack.c.bf16 %v258, %v258
    %v263 = vpack.c.bf16 %v259, %v259
    %v264 = vpack.c.bf16 %v260, %v260
    %v265 = vld [vmem:[%s3] sm:$0xf]
    %v266 = vld [vmem:[%s3 + $0x4] sm:$0xf]
    %v267 = vld [vmem:[%s3 + $0x8] sm:$0xf]
    %v268 = vld [vmem:[%s3 + $0xc] sm:$0xf]
    %v269 = vld [vmem:[%s3 + $0x10] sm:$0xf]
    %v270 = vld [vmem:[%s3 + $0x14] sm:$0xf]
    %v271 = vld [vmem:[%s3 + $0x18] sm:$0xf]
    %v272 = vld [vmem:[%s3 + $0x1c] sm:$0xf]
    %v273 = vld [vmem:[%s3 + $0x20] sm:$0xf]
    %v274 = vld [vmem:[%s3 + $0x24] sm:$0xf]
    %v275 = vld [vmem:[%s3 + $0x28] sm:$0xf]
    %v276 = vld [vmem:[%s3 + $0x2c] sm:$0xf]
    %v277 = vld [vmem:[%s3 + $0x30] sm:$0xf]
    %v278 = vld [vmem:[%s3 + $0x34] sm:$0xf]
    %v279 = vld [vmem:[%s3 + $0x38] sm:$0xf]
    %v280 = vld [vmem:[%s3 + $0x3c] sm:$0xf]
    %v281 = vld [vmem:[%s3 + $0x40] sm:$0xf]
    %v282 = vld [vmem:[%s3 + $0x44] sm:$0xf]
    %v283 = vld [vmem:[%s3 + $0x48] sm:$0xf]
    %v284 = vld [vmem:[%s3 + $0x4c] sm:$0xf]
    %v285 = vld [vmem:[%s3 + $0x50] sm:$0xf]
    %v286 = vld [vmem:[%s3 + $0x54] sm:$0xf]
    %v287 = vld [vmem:[%s3 + $0x58] sm:$0xf]
    %v288 = vld [vmem:[%s3 + $0x5c] sm:$0xf]
    %v289 = vld [vmem:[%s3 + $0x60] sm:$0xf]
    %v290 = vld [vmem:[%s3 + $0x64] sm:$0xf]
    %v291 = vld [vmem:[%s3 + $0x68] sm:$0xf]
    %v292 = vld [vmem:[%s3 + $0x6c] sm:$0xf]
    %v293 = vld [vmem:[%s3 + $0x70] sm:$0xf]
    %v294 = vld [vmem:[%s3 + $0x74] sm:$0xf]
    %v295 = vld [vmem:[%s3 + $0x78] sm:$0xf]
    %v296 = vld [vmem:[%s3 + $0x7c] sm:$0xf]
    %v297 = vld [vmem:[%s3 + $0x80] sm:$0xf]
    %v298 = vld [vmem:[%s3 + $0x84] sm:$0xf]
    %v299 = vld [vmem:[%s3 + $0x88] sm:$0xf]
    %v300 = vld [vmem:[%s3 + $0x8c] sm:$0xf]
    %v301 = vld [vmem:[%s3 + $0x90] sm:$0xf]
    %v302 = vld [vmem:[%s3 + $0x94] sm:$0xf]
    %v303 = vld [vmem:[%s3 + $0x98] sm:$0xf]
    %v304 = vld [vmem:[%s3 + $0x9c] sm:$0xf]
    %v305 = vld [vmem:[%s3 + $0xa0] sm:$0xf]
    %v306 = vld [vmem:[%s3 + $0xa4] sm:$0xf]
    %v307 = vld [vmem:[%s3 + $0xa8] sm:$0xf]
    %v308 = vld [vmem:[%s3 + $0xac] sm:$0xf]
    %v309 = vld [vmem:[%s3 + $0xb0] sm:$0xf]
    %v310 = vld [vmem:[%s3 + $0xb4] sm:$0xf]
    %v311 = vld [vmem:[%s3 + $0xb8] sm:$0xf]
    %v312 = vld [vmem:[%s3 + $0xbc] sm:$0xf]
    %v313 = vld [vmem:[%s3 + $0xc0] sm:$0xf]
    %v314 = vld [vmem:[%s3 + $0xc4] sm:$0xf]
    %v315 = vld [vmem:[%s3 + $0xc8] sm:$0xf]
    %v316 = vld [vmem:[%s3 + $0xcc] sm:$0xf]
    %v317 = vld [vmem:[%s3 + $0xd0] sm:$0xf]
    %v318 = vld [vmem:[%s3 + $0xd4] sm:$0xf]
    %v319 = vld [vmem:[%s3 + $0xd8] sm:$0xf]
    %v320 = vld [vmem:[%s3 + $0xdc] sm:$0xf]
    %v321 = vld [vmem:[%s3 + $0xe0] sm:$0xf]
    %v322 = vld [vmem:[%s3 + $0xe4] sm:$0xf]
    %v323 = vld [vmem:[%s3 + $0xe8] sm:$0xf]
    %v324 = vld [vmem:[%s3 + $0xec] sm:$0xf]
    %v325 = vld [vmem:[%s3 + $0xf0] sm:$0xf]
    %v326 = vld [vmem:[%s3 + $0xf4] sm:$0xf]
    %v327 = vld [vmem:[%s3 + $0xf8] sm:$0xf]
    %v328 = vld [vmem:[%s3 + $0xfc] sm:$0xf]
    %v329 = vld [vmem:[%s4] sm:$0x1]
    %v331 = vlaneseq
    %v332 = vshrl.u32 %v331, 7
    %v333 = vsub.s32 0, %v332
    %v334 = vrot.slane %v329, %v333
    %v400 = vunpack.c.l.b16 %v265
    %v401 = vunpack.c.l.b16 %v266
    %v402 = vunpack.c.l.b16 %v267
    %v403 = vunpack.c.l.b16 %v268
    %v404 = vunpack.c.l.b16 %v269
    %v405 = vunpack.c.l.b16 %v270
    %v406 = vunpack.c.l.b16 %v271
    %v407 = vunpack.c.l.b16 %v272
    %v408 = vunpack.c.l.b16 %v273
    %v409 = vunpack.c.l.b16 %v274
    %v410 = vunpack.c.l.b16 %v275
    %v411 = vunpack.c.l.b16 %v276
    %v412 = vunpack.c.l.b16 %v277
    %v413 = vunpack.c.l.b16 %v278
    %v414 = vunpack.c.l.b16 %v279
    %v415 = vunpack.c.l.b16 %v280
    %v416 = vunpack.c.l.b16 %v281
    %v417 = vunpack.c.l.b16 %v282
    %v418 = vunpack.c.l.b16 %v283
    %v419 = vunpack.c.l.b16 %v284
    %v420 = vunpack.c.l.b16 %v285
    %v421 = vunpack.c.l.b16 %v286
    %v422 = vunpack.c.l.b16 %v287
    %v423 = vunpack.c.l.b16 %v288
    %v424 = vunpack.c.l.b16 %v289
    %v425 = vunpack.c.l.b16 %v290
    %v426 = vunpack.c.l.b16 %v291
    %v427 = vunpack.c.l.b16 %v292
    %v428 = vunpack.c.l.b16 %v293
    %v429 = vunpack.c.l.b16 %v294
    %v430 = vunpack.c.l.b16 %v295
    %v431 = vunpack.c.l.b16 %v296
    %v432 = vunpack.c.l.b16 %v297
    %v433 = vunpack.c.l.b16 %v298
    %v434 = vunpack.c.l.b16 %v299
    %v435 = vunpack.c.l.b16 %v300
    %v436 = vunpack.c.l.b16 %v301
    %v437 = vunpack.c.l.b16 %v302
    %v438 = vunpack.c.l.b16 %v303
    %v439 = vunpack.c.l.b16 %v304
    %v440 = vunpack.c.l.b16 %v305
    %v441 = vunpack.c.l.b16 %v306
    %v442 = vunpack.c.l.b16 %v307
    %v443 = vunpack.c.l.b16 %v308
    %v444 = vunpack.c.l.b16 %v309
    %v445 = vunpack.c.l.b16 %v310
    %v446 = vunpack.c.l.b16 %v311
    %v447 = vunpack.c.l.b16 %v312
    %v448 = vunpack.c.l.b16 %v313
    %v449 = vunpack.c.l.b16 %v314
    %v450 = vunpack.c.l.b16 %v315
    %v451 = vunpack.c.l.b16 %v316
    %v452 = vunpack.c.l.b16 %v317
    %v453 = vunpack.c.l.b16 %v318
    %v454 = vunpack.c.l.b16 %v319
    %v455 = vunpack.c.l.b16 %v320
    %v456 = vunpack.c.l.b16 %v321
    %v457 = vunpack.c.l.b16 %v322
    %v458 = vunpack.c.l.b16 %v323
    %v459 = vunpack.c.l.b16 %v324
    %v460 = vunpack.c.l.b16 %v325
    %v461 = vunpack.c.l.b16 %v326
    %v462 = vunpack.c.l.b16 %v327
    %v463 = vunpack.c.l.b16 %v328
    %v464 = vpack.c.b16 %v401, %v400
    %v465 = vpack.c.b16 %v403, %v402
    %v466 = vpack.c.b16 %v405, %v404
    %v467 = vpack.c.b16 %v407, %v406
    %v468 = vpack.c.b16 %v409, %v408
    %v469 = vpack.c.b16 %v411, %v410
    %v470 = vpack.c.b16 %v413, %v412
    %v471 = vpack.c.b16 %v415, %v414
    %v472 = vpack.c.b16 %v417, %v416
    %v473 = vpack.c.b16 %v419, %v418
    %v474 = vpack.c.b16 %v421, %v420
    %v475 = vpack.c.b16 %v423, %v422
    %v476 = vpack.c.b16 %v425, %v424
    %v477 = vpack.c.b16 %v427, %v426
    %v478 = vpack.c.b16 %v429, %v428
    %v479 = vpack.c.b16 %v431, %v430
    %v480 = vpack.c.b16 %v433, %v432
    %v481 = vpack.c.b16 %v435, %v434
    %v482 = vpack.c.b16 %v437, %v436
    %v483 = vpack.c.b16 %v439, %v438
    %v484 = vpack.c.b16 %v441, %v440
    %v485 = vpack.c.b16 %v443, %v442
    %v486 = vpack.c.b16 %v445, %v444
    %v487 = vpack.c.b16 %v447, %v446
    %v488 = vpack.c.b16 %v449, %v448
    %v489 = vpack.c.b16 %v451, %v450
    %v490 = vpack.c.b16 %v453, %v452
    %v491 = vpack.c.b16 %v455, %v454
    %v492 = vpack.c.b16 %v457, %v456
    %v493 = vpack.c.b16 %v459, %v458
    %v494 = vpack.c.b16 %v461, %v460
    %v495 = vpack.c.b16 %v463, %v462
    %528 = vmatprep.subr.bf16.mxu0 0
    %529 = vmatpush1.bf16.msra.mxu0 %v464
    %530 = vmatprep.subr.bf16.mxu0 0
    %531 = vmatpush1.bf16.msra.mxu0 %v465
    %532 = vmatprep.subr.bf16.mxu0 0
    %533 = vmatpush1.bf16.msra.mxu0 %v466
    %534 = vmatprep.subr.bf16.mxu0 0
    %535 = vmatpush1.bf16.msra.mxu0 %v467
    %536 = vmatprep.subr.bf16.mxu0 0
    %537 = vmatpush1.bf16.msra.mxu0 %v468
    %538 = vmatprep.subr.bf16.mxu0 0
    %539 = vmatpush1.bf16.msra.mxu0 %v469
    %540 = vmatprep.subr.bf16.mxu0 0
    %541 = vmatpush1.bf16.msra.mxu0 %v470
    %542 = vmatprep.subr.bf16.mxu0 0
    %543 = vmatpush1.bf16.msra.mxu0 %v471
    %544 = vmatprep.subr.bf16.mxu0 0
    %545 = vmatpush1.bf16.msra.mxu0 %v472
    %546 = vmatprep.subr.bf16.mxu0 0
    %547 = vmatpush1.bf16.msra.mxu0 %v473
    %548 = vmatprep.subr.bf16.mxu0 0
    %549 = vmatpush1.bf16.msra.mxu0 %v474
    %550 = vmatprep.subr.bf16.mxu0 0
    %551 = vmatpush1.bf16.msra.mxu0 %v475
    %552 = vmatprep.subr.bf16.mxu0 0
    %553 = vmatpush1.bf16.msra.mxu0 %v476
    %554 = vmatprep.subr.bf16.mxu0 0
    %555 = vmatpush1.bf16.msra.mxu0 %v477
    %556 = vmatprep.subr.bf16.mxu0 0
    %557 = vmatpush1.bf16.msra.mxu0 %v478
    %558 = vmatprep.subr.bf16.mxu0 0
    %559 = vmatpush1.bf16.msra.mxu0 %v479
    %560 = vmatprep.mubr.bf16.mxu0 %v262
    %561 = vmatmul.mubr.bf16.gmra.mrb[0].mxu0 %v261
    %v562 = vpop.f32.mrb[0].mxu0
    %v563 = vadd.f32 %v334, %v562
    %v564 = vpop.f32.mrb[0].mxu0
    %v565 = vpop.f32.mrb[0].mxu0
    %v566 = vpop.f32.mrb[0].mxu0
    %567 = vdwg.mxu0
    %568 = vmatprep.subr.bf16.mxu0 0
    %569 = vmatpush1.bf16.msra.mxu0 %v480
    %570 = vmatprep.subr.bf16.mxu0 0
    %571 = vmatpush1.bf16.msra.mxu0 %v481
    %572 = vmatprep.subr.bf16.mxu0 0
    %573 = vmatpush1.bf16.msra.mxu0 %v482
    %574 = vmatprep.subr.bf16.mxu0 0
    %575 = vmatpush1.bf16.msra.mxu0 %v483
    %576 = vmatprep.subr.bf16.mxu0 0
    %577 = vmatpush1.bf16.msra.mxu0 %v484
    %578 = vmatprep.subr.bf16.mxu0 0
    %579 = vmatpush1.bf16.msra.mxu0 %v485
    %580 = vmatprep.subr.bf16.mxu0 0
    %581 = vmatpush1.bf16.msra.mxu0 %v486
    %582 = vmatprep.subr.bf16.mxu0 0
    %583 = vmatpush1.bf16.msra.mxu0 %v487
    %584 = vmatprep.subr.bf16.mxu0 0
    %585 = vmatpush1.bf16.msra.mxu0 %v488
    %586 = vmatprep.subr.bf16.mxu0 0
    %587 = vmatpush1.bf16.msra.mxu0 %v489
    %588 = vmatprep.subr.bf16.mxu0 0
    %589 = vmatpush1.bf16.msra.mxu0 %v490
    %590 = vmatprep.subr.bf16.mxu0 0
    %591 = vmatpush1.bf16.msra.mxu0 %v491
    %592 = vmatprep.subr.bf16.mxu0 0
    %593 = vmatpush1.bf16.msra.mxu0 %v492
    %594 = vmatprep.subr.bf16.mxu0 0
    %595 = vmatpush1.bf16.msra.mxu0 %v493
    %596 = vmatprep.subr.bf16.mxu0 0
    %597 = vmatpush1.bf16.msra.mxu0 %v494
    %598 = vmatprep.subr.bf16.mxu0 0
    %599 = vmatpush1.bf16.msra.mxu0 %v495
    %600 = vmatprep.mubr.bf16.mxu0 %v264
    %601 = vmatmul.mubr.bf16.gmra.mrb[0].mxu0 %v263
    %v602 = vpop.f32.mrb[0].mxu0
    %v603 = vadd.f32 %v563, %v602
    %v604 = vpop.f32.mrb[0].mxu0
    %v605 = vpop.f32.mrb[0].mxu0
    %v606 = vpop.f32.mrb[0].mxu0
    %607 = vdwg.mxu0
    %608 = vst [vmem:[#allocation2] sm:$0xff] %v603
    // Predicated region
    $region22: #{rt1_state_forward.1} parent=1 // pred_check
      _
    $region23: #{rt1_state_forward.1} parent=1 // pred_check_branch
      %610 = sbr.rel (0) target = $region25
    $region24: #{rt1_state_forward.1} parent=1 // pred_region
      %s612 = ssub.s32 128, 32
      %613 = vsyncadd [#allocation3], %s612
      %s614 = sshll.u32 [#allocation2], 4
      %s615 = int_to_ptr.vmem [resolvable:$true] %s614
      %620 = dma.vmem_to_hbm [thread:$0]  %s615, 32, %s5, [#allocation3], 32, 32, 2
    $region25: #{rt1_state_forward.1} parent=1 // pred_fallthru
      _
    // Predicated region
    $region26: #{rt1_state_forward.1} parent=1 // pred_check
      _
    $region27: #{rt1_state_forward.1} parent=1 // pred_check_branch
      %622 = sbr.rel (0) target = $region29
    $region28: #{rt1_state_forward.1} parent=1 // pred_region
      %623 = dma.done [#allocation3], 128
    $region29: #{rt1_state_forward.1} parent=1 // pred_fallthru
      _
    %624 = vsyncpa [#allocation3], 1

</llo_original>
